<compile_context>
chip_gen: v6e
topology: v6e:2x2x1
jax: 0.10.0
libtpu: 0.0.40
codegen_flags: <defaults>
</compile_context>

<pallas_src>
import jax
import jax.numpy as jnp
from jax.experimental import pallas as pl
from jax.experimental.pallas import tpu as pltpu


NEG_SLOPE = 0.01      # nn.LeakyReLU default negative_slope
_LANE = 128           # TPU lane width
_SUBLANE = 8
_MAX_COUT_TILE = 512  # cap on the C_out block (rows of W / output per step)


def _round_up(x, m):
    return -(-x // m) * m


def _vmem_limits():
    """Generation-aware (tile budget, scoped limit) in bytes."""
    try:
        cap = int(pltpu.get_tpu_info().vmem_capacity_bytes)
    except Exception:
        cap = 64 << 20
    if not cap or cap < (32 << 20):
        cap = 64 << 20
    limit = min(cap - (8 << 20), 96 << 20)   # headroom for Mosaic internal scratch
    budget = limit - (8 << 20)               # what our tiles may consume
    return budget, limit


def _pick_tiles(B, S, C_in, C_out, in_isz, out_isz, budget):
    """Choose (co_t, n_co, ts): C_out block rows and spatial (lane) tile width."""
    # C_out tile: multiple of 8 (or the full C_out), small enough that the
    # double-buffered weight block uses at most ~1/3 of the budget.
    max_co_by_w = (budget // 3) // max(1, 2 * C_in * in_isz)
    co_t = min(C_out, _MAX_COUT_TILE, max(_SUBLANE, int(max_co_by_w)))
    if co_t < C_out:
        co_t = max(_SUBLANE, (co_t // _SUBLANE) * _SUBLANE)  # block dim multiple of 8
    n_co = pl.cdiv(C_out, co_t)

    # Spatial tile: as large as the remaining budget allows (byte-targeted,
    # no fixed lane cap), multiple of 128, never beyond the (rounded) problem.
    w_bytes = 2 * co_t * C_in * in_isz                 # double-buffered weight block
    per_col = (2 * C_in * in_isz                       # double-buffered x tile
               + 2 * co_t * out_isz                    # double-buffered out tile
               + 2 * co_t * 4)                         # f32 dot result + lrelu temp
    avail = max(budget - w_bytes, _LANE * per_col)
    ts = (avail // per_col) // _LANE * _LANE
    ts = int(max(_LANE, min(ts, _round_up(S, _LANE))))

    # v7x megacore: keep at least 2 parallel grid steps when possible.
    if B * n_co == 1 and S > _LANE:
        ts = min(ts, _round_up(-(-S // 2), _LANE))

    return co_t, n_co, ts


def _conv1x1_lrelu_kernel(w_ref, x_ref, o_ref):
    # w_ref: (co_t, C_in)    weight block (resident across the spatial axis)
    # x_ref: (1, C_in, ts)   one batch element, one spatial tile
    # o_ref: (1, co_t, ts)   lane-dense output tile
    acc = jnp.dot(w_ref[...], x_ref[0], preferred_element_type=jnp.float32)
    # LeakyReLU(0.01) == max(y, 0.01*y): single vmax on the f32 accumulator.
    o_ref[0] = jnp.maximum(acc, NEG_SLOPE * acc).astype(o_ref.dtype)


def conv_block_forward(x_nchw, weight_oihw, *, compute_dtype=None):
    """Forward of convBlock: 1x1 conv (no bias, stride 1) + LeakyReLU(0.01).

    x_nchw:        (B, C_in, H, W)
    weight_oihw:   (C_out, C_in, 1, 1)   -- torch Conv2d weight layout
    compute_dtype: optionally run the matmul I/O in e.g. bf16.  Only worthwhile
                   when x is already bf16 in HBM (or the cast fuses into the
                   producer); a standalone f32->bf16 pass costs a full HBM
                   round trip.  Accumulation / LeakyReLU stay f32 either way.
    returns:       (B, C_out, H, W) in x's dtype
    """
    # TODO(synk): stride > 1 (constructor option, default 1) would need a strided
    # spatial subsample before the matmul; only stride=1 is implemented here.
    B, C_in, H, W = x_nchw.shape
    C_out = weight_oihw.shape[0]
    out_dtype = x_nchw.dtype

    # Free reshapes only -- no NCHW<->NHWC transposes, no pad, no slice.
    w_mat = weight_oihw.reshape(C_out, C_in)       # (C_out, C_in)
    x_mat = x_nchw.reshape(B, C_in, H * W)         # (B, C_in, S), channel-major
    if compute_dtype is not None:
        w_mat = w_mat.astype(compute_dtype)
        x_mat = x_mat.astype(compute_dtype)

    S = H * W
    in_isz = jnp.dtype(x_mat.dtype).itemsize
    out_isz = jnp.dtype(out_dtype).itemsize
    budget, vmem_limit = _vmem_limits()
    co_t, n_co, ts = _pick_tiles(B, S, C_in, C_out, in_isz, out_isz, budget)
    n_s = pl.cdiv(S, ts)

    grid = (B, n_co, n_s)   # spatial innermost -> weight block stays resident

    bytes_accessed = (n_co * B * C_in * S * in_isz        # x (re-read per C_out tile)
                      + B * n_co * co_t * C_in * in_isz   # weight fetches
                      + B * C_out * S * out_isz)          # output

    y_mat = pl.pallas_call(
        _conv1x1_lrelu_kernel,
        out_shape=jax.ShapeDtypeStruct((B, C_out, S), out_dtype),
        grid_spec=pltpu.PrefetchScalarGridSpec(
            num_scalar_prefetch=0,
            grid=grid,
            in_specs=[
                # Weight block: constant across the (innermost) spatial axis.
                pl.BlockSpec((co_t, C_in), lambda b, co, s: (co, 0)),
                # Activation tile: one batch element, one spatial slab.
                pl.BlockSpec((1, C_in, ts), lambda b, co, s: (b, 0, s)),
            ],
            out_specs=pl.BlockSpec((1, co_t, ts), lambda b, co, s: (b, co, s)),
        ),
        compiler_params=pltpu.CompilerParams(
            dimension_semantics=("parallel", "parallel", "parallel"),
            vmem_limit_bytes=vmem_limit,
        ),
        cost_estimate=pl.CostEstimate(
            flops=2 * B * S * C_in * C_out,
            transcendentals=0,
            bytes_accessed=bytes_accessed,
        ),
    )(w_mat, x_mat)

    return y_mat.reshape(B, C_out, H, W)


def _reference(x_nchw, weight_oihw):
    # Pure-JAX reference: 1x1 conv == einsum over the channel dim, then LeakyReLU.
    w = weight_oihw.reshape(weight_oihw.shape[0], weight_oihw.shape[1])  # (C_out, C_in)
    y = jnp.einsum("bchw,oc->bohw", x_nchw, w)
    return jnp.where(y > 0, y, NEG_SLOPE * y)


if __name__ == "__main__":
    # Small shapes consistent with the module (inplanes -> planes, 1x1, stride 1).
    # H*W = 100 is deliberately NOT a multiple of 128 to exercise the ragged
    # (partial last spatial block, masked store) path with no wrapper pad/slice.
    B, C_in, C_out, H, W = 2, 32, 16, 10, 10

    key = jax.random.PRNGKey(0)
    kx, kw = jax.random.split(key)
    x = jax.random.normal(kx, (B, C_in, H, W), dtype=jnp.float32)
    # Deterministic kaiming-ish weight; shape matches nn.Conv2d(C_in, C_out, 1).
    weight = jax.random.normal(kw, (C_out, C_in, 1, 1), dtype=jnp.float32) * (2.0 / C_in) ** 0.5

    y = conv_block_forward(x, weight)
    y = jax.block_until_ready(y)

    y_ref = _reference(x, weight)
    assert y.shape == (B, C_out, H, W)
    assert jnp.allclose(y, y_ref, atol=1e-5, rtol=1e-5), float(jnp.max(jnp.abs(y - y_ref)))

    print("KERNEL_OK")
</pallas_src>

<mosaic_0001>
module attributes {stable_mosaic.version = 11 : i64} {
  func.func @_conv1x1_lrelu_kernel(%arg0: i32, %arg1: i32, %arg2: i32, %arg3: memref<16x32xf32, #tpu.memory_space<vmem>>, %arg4: memref<1x32x128xf32, #tpu.memory_space<vmem>>, %arg5: memref<1x16x128xf32, #tpu.memory_space<vmem>>) attributes {dimension_semantics = [#tpu.dimension_semantics<parallel>, #tpu.dimension_semantics<parallel>, #tpu.dimension_semantics<parallel>], iteration_bounds = array<i64: 2, 1, 1>, scalar_prefetch = 0 : i64, scratch_operands = 0 : i64, tpu.core_type = #tpu.core_type<tc>, window_params = [{transform_indices = @transform_0, window_bounds = array<i64: 16, 32>}, {transform_indices = @transform_1, window_bounds = array<i64: 1, 32, 128>}, {transform_indices = @transform_2, window_bounds = array<i64: 1, 16, 128>}]} {
    %c0 = arith.constant 0 : index
    %c0_0 = arith.constant 0 : index
    %0 = vector.load %arg3[%c0, %c0_0] : memref<16x32xf32, #tpu.memory_space<vmem>>, vector<16x32xf32>
    %c0_1 = arith.constant 0 : index
    %c0_2 = arith.constant 0 : index
    %c0_3 = arith.constant 0 : index
    %1 = vector.load %arg4[%c0_1, %c0_2, %c0_3] : memref<1x32x128xf32, #tpu.memory_space<vmem>>, vector<1x32x128xf32>
    %2 = vector.shape_cast %1 : vector<1x32x128xf32> to vector<32x128xf32>
    %cst = arith.constant dense<0.000000e+00> : vector<16x128xf32>
    %3 = tpu.matmul %0, %2, %cst {dimension_numbers = #tpu.dot_dimension_numbers<[1], [0], [0], [1], [0, 0, 1, 1], [], []>} : vector<16x32xf32>, vector<32x128xf32>, vector<16x128xf32> -> vector<16x128xf32>
    %cst_4 = arith.constant 0.00999999977 : f32
    %4 = vector.broadcast %cst_4 : f32 to vector<16x128xf32>
    %5 = arith.mulf %4, %3 : vector<16x128xf32>
    %6 = arith.maximumf %3, %5 : vector<16x128xf32>
    %c0_5 = arith.constant 0 : index
    %c0_6 = arith.constant 0 : index
    %c0_7 = arith.constant 0 : index
    %7 = vector.load %arg5[%c0_5, %c0_6, %c0_7] : memref<1x16x128xf32, #tpu.memory_space<vmem>>, vector<1x16x128xf32>
    %8 = vector.shape_cast %7 : vector<1x16x128xf32> to vector<16x128xf32>
    %9 = vector.shape_cast %6 : vector<16x128xf32> to vector<1x16x128xf32>
    tpu.vector_store %arg5[%c0_5, %c0_6, %c0_7], %9 {strides = array<i32>} : memref<1x16x128xf32, #tpu.memory_space<vmem>>, vector<1x16x128xf32>,
    return
  }
  func.func @transform_0(%arg0: i32, %arg1: i32, %arg2: i32) -> (i32, i32) {
    %c0_i32 = arith.constant 0 : i32
    %c0_i32_0 = arith.constant 0 : i32
    return %arg1, %c0_i32 : i32, i32
  }
  func.func @transform_1(%arg0: i32, %arg1: i32, %arg2: i32) -> (i32, i32, i32) {
    %c0_i32 = arith.constant 0 : i32
    %c0_i32_0 = arith.constant 0 : i32
    return %arg0, %c0_i32, %arg2 : i32, i32, i32
  }
  func.func @transform_2(%arg0: i32, %arg1: i32, %arg2: i32) -> (i32, i32, i32) {
    %c0_i32 = arith.constant 0 : i32
    return %arg0, %arg1, %arg2 : i32, i32, i32
  }
}

</mosaic_0001>

<llo_original>
// kernel: tpu_custom_call.1
$region0: #{tpu_custom_call.1}
  #allocation0 [shape = 'u32[]', space=smem, size = 0x4, offset = 0x4, fixed_abs, tag = 'smem constant byte address 0x4 - core index']
  #allocation1 [shape = 'u32[144,128]{1,0:T(1,128)}', space=vmem, size = 0x12000, scoped, tag = 'internal scratch']
  %s0 = inlined_call_operand.hbm [shape: f32[16,32], index: 0, kind: input, shape index: {}]
  %s1 = inlined_call_operand.hbm [shape: f32[2,32,100], index: 1, kind: input, shape index: {}]
  %s2 = inlined_call_operand.hbm [shape: f32[2,16,100], index: 2, kind: output, shape index: {}]
  %s3 = sld [smem:[#allocation0]]
  $region49: #{tpu_custom_call.1} parent=0
    _
  %s5 = ssub.s32 1, %s3
  %s6 = scalar_select 0, %s5, %s3
  $region1: #{tpu_custom_call.1} parent=0
    #allocation2 [shape = 'u8[8192]{0}', space=vmem, size = 0x2000, scoped, tag = 'input window, operand 0, single buffered']
    #allocation3 [shape = 's32[2]{0}', space=sflag, size = 0x8, scoped, tag = 'scoped memory for tpu_custom_call.1']
    #allocation4 [shape = 's32[2]{0}', space=sflag, size = 0x8, scoped, tag = 'scoped memory for tpu_custom_call.1']
    #allocation5 [shape = 'u8[32768]{0}', space=vmem, size = 0x8000, scoped, tag = 'input window, operand 1']
    #allocation6 [shape = 's32[2]{0}', space=sflag, size = 0x8, scoped, tag = 'scoped memory for tpu_custom_call.1']
    #allocation7 [shape = 'u8[16384]{0}', space=vmem, size = 0x4000, scoped, tag = 'output window, operand 0']
    %7 = vsyncpa [#allocation3], 0
    %8 = vsyncpa [#allocation6], 0
    %s9 = scalar_lea.sflag [#allocation6], 1
    %10 = vsyncpa %s9, 0
    %11 = vsyncpa [#allocation4], 0
    %s12 = scalar_lea.sflag [#allocation4], 1
    %13 = vsyncpa %s12, 0
    loop: start=0, step=1, limit=4
    $region2: #{tpu_custom_call.1} parent=1 // loop_pre_header
      _
    $region3: #{tpu_custom_call.1} parent=1 // loop_header
      %s15 = sphi 0, %s19
      %p16 = scmp.ge.s32.totalorder %s15, 4
      %s22 = sphi 0, %s41
      %s23 = sphi 0, %s37
      %s24 = sphi 0, %s33
      %s25 = sphi 0, %s22
      %s26 = sphi 0, %s23
      %s27 = sphi 0, %s24
      %s28 = sphi 0, %s25
      %s29 = sphi 0, %s26
      %s30 = sphi 0, %s27
      %s44 = sphi 0, %s46
      %s47 = sphi 0, %s44
      %s48 = sphi 0, %s47
      %s64 = sphi 0, %s48
      %s72 = sphi 0, %s74
      %s75 = sphi 0, %s72
      %s76 = sphi 0, %s75
      %s92 = sphi 0, %s76
      %s102 = sphi 0, %s104
      %s105 = sphi 0, %s102
      %s106 = sphi 0, %s105
      %s122 = sphi 0, %s106
    $region4: #{tpu_custom_call.1} parent=1 // loop_header_branch
      %18 = sbr.rel (%p16) target = $region8
    $region5: #{tpu_custom_call.1} parent=1 // loop_body
      %s20 = ssub.s32 %s15, 1
      %s21 = ssub.s32 %s15, 2
      %s31 = sadd.s32 1, %s24
      %p32 = scmp.ge.s32.totalorder %s31, 1
      %s33 = scalar_select %p32, 0, %s31
      %s34 = sadd.s32 1, %s23
      %s35 = scalar_select %p32, %s34, %s23
      %p36 = scmp.ge.s32.totalorder %s35, 1
      %s37 = scalar_select %p36, 0, %s35
      %s38 = sadd.s32 1, %s22
      %s39 = scalar_select %p36, %s38, %s22
      %p40 = scmp.ge.s32.totalorder %s39, 2
      %s41 = scalar_select %p40, 0, %s39
      %s42 = ssub.s32 %s23, %s37
      %p43 = scmp.eq.s32.totalorder %s42, 0
      %s45 = sadd.s32 %s44, 1
      %s46 = scalar_select %p43, %s44, %s45
      %p49 = pneg %p43
      %p50 = scmp.eq.s32.totalorder %s15, 1
      %p51 = por %p49, %p50
      %p52 = scmp.ne.s32.totalorder %s44, %s47
      %p53 = scmp.eq.s32.totalorder %s15, 0
      %p54 = por %p52, %p53
      %p55 = scmp.ne.s32.totalorder %s44, %s47
      %p56 = scmp.eq.s32.totalorder %s20, 1
      %p57 = por %p55, %p56
      %p58 = scmp.ne.s32.totalorder %s47, %s48
      %p59 = scmp.eq.s32.totalorder %s20, 0
      %p60 = por %p58, %p59
      %p61 = scmp.ne.s32.totalorder %s47, %s48
      %p62 = scmp.eq.s32.totalorder %s21, 1
      %p63 = por %p61, %p62
      %p65 = scmp.ne.s32.totalorder %s48, %s64
      %p66 = scmp.eq.s32.totalorder %s21, 0
      %p67 = por %p65, %p66
      %s68 = ssub.s32 %s22, %s41
      %s69 = ssub.s32 %s24, %s33
      %s70 = sor.u32 %s68, %s69
      %p71 = scmp.eq.s32.totalorder %s70, 0
      %s73 = sadd.s32 %s72, 1
      %s74 = scalar_select %p71, %s72, %s73
      %p77 = pneg %p71
      %p78 = scmp.eq.s32.totalorder %s15, 1
      %p79 = por %p77, %p78
      %p80 = scmp.ne.s32.totalorder %s72, %s75
      %p81 = scmp.eq.s32.totalorder %s15, 0
      %p82 = por %p80, %p81
      %p83 = scmp.ne.s32.totalorder %s72, %s75
      %p84 = scmp.eq.s32.totalorder %s20, 1
      %p85 = por %p83, %p84
      %p86 = scmp.ne.s32.totalorder %s75, %s76
      %p87 = scmp.eq.s32.totalorder %s20, 0
      %p88 = por %p86, %p87
      %p89 = scmp.ne.s32.totalorder %s75, %s76
      %p90 = scmp.eq.s32.totalorder %s21, 1
      %p91 = por %p89, %p90
      %p93 = scmp.ne.s32.totalorder %s76, %s92
      %p94 = scmp.eq.s32.totalorder %s21, 0
      %p95 = por %p93, %p94
      %s96 = ssub.s32 %s22, %s41
      %s97 = ssub.s32 %s23, %s37
      %s98 = sor.u32 %s96, %s97
      %s99 = ssub.s32 %s24, %s33
      %s100 = sor.u32 %s98, %s99
      %p101 = scmp.eq.s32.totalorder %s100, 0
      %s103 = sadd.s32 %s102, 1
      %s104 = scalar_select %p101, %s102, %s103
      %p107 = pneg %p101
      %p108 = scmp.eq.s32.totalorder %s15, 1
      %p109 = por %p107, %p108
      %p110 = scmp.ne.s32.totalorder %s102, %s105
      %p111 = scmp.eq.s32.totalorder %s15, 0
      %p112 = por %p110, %p111
      %p113 = scmp.ne.s32.totalorder %s102, %s105
      %p114 = scmp.eq.s32.totalorder %s20, 1
      %p115 = por %p113, %p114
      %p116 = scmp.ne.s32.totalorder %s105, %s106
      %p117 = scmp.eq.s32.totalorder %s20, 0
      %p118 = por %p116, %p117
      %p119 = scmp.ne.s32.totalorder %s105, %s106
      %p120 = scmp.eq.s32.totalorder %s21, 1
      %p121 = por %p119, %p120
      %p123 = scmp.ne.s32.totalorder %s106, %s122
      %p124 = scmp.eq.s32.totalorder %s21, 0
      %p125 = por %p123, %p124
      %p126 = scmp.le.s32.totalorder 1, %s15
      %p127 = scmp.lt.s32.totalorder %s15, 3
      %p128 = pnand %p126, %p127
      %p129 = pneg %p128
      // Predicated region
      $region9: #{tpu_custom_call.1} parent=5 // pred_check
        _
      $region10: #{tpu_custom_call.1} parent=5 // pred_check_branch
        %131 = sbr.rel (%p128) target = $region12
      $region11: #{tpu_custom_call.1} parent=5 // pred_region
        %s132 = ssub.s32 %s15, 1
        // Predicated region
        $region13: #{tpu_custom_call.1} parent=11 // pred_check
          %p133 = pneg %p60
        $region14: #{tpu_custom_call.1} parent=11 // pred_check_branch
          %135 = sbr.rel (%p133) target = $region16
        $region15: #{tpu_custom_call.1} parent=11 // pred_region
          %s136 = smul.u32 2, %s26
          %s138 = ssub.s32 256, 256
          %139 = vsyncadd [#allocation3], %s138
          %s140 = smul.addr %s136, 128
          %s141 = scalar_lea.hbm %s0, %s140
          %s142 = sshll.u32 [#allocation2], 4
          %s143 = int_to_ptr.vmem [resolvable:$true] %s142
          %148 = dma.hbm_to_vmem [thread:$0]  %s141, 256, %s143, [#allocation3], 128, 128, 8
        $region16: #{tpu_custom_call.1} parent=11 // pred_fallthru
          _
      $region12: #{tpu_custom_call.1} parent=5 // pred_fallthru
        _
      %p149 = scmp.lt.s32.totalorder %s15, 2
      // Predicated region
      $region17: #{tpu_custom_call.1} parent=5 // pred_check
        %p150 = pneg %p149
      $region18: #{tpu_custom_call.1} parent=5 // pred_check_branch
        %152 = sbr.rel (%p150) target = $region20
      $region19: #{tpu_custom_call.1} parent=5 // pred_region
        // Predicated region
        $region21: #{tpu_custom_call.1} parent=19 // pred_check
          %p153 = pneg %p82
        $region22: #{tpu_custom_call.1} parent=19 // pred_check_branch
          %155 = sbr.rel (%p153) target = $region24
        $region23: #{tpu_custom_call.1} parent=19 // pred_region
          %s156 = sand.u32 %s72, 1
          %s157 = scalar_lea.sflag [#allocation6], %s156
          %s158 = sand.u32 %s72, 1
          %s159 = smul.addr %s158, 32
          %s160 = scalar_lea.vmem [#allocation5], %s159
          %s162 = ssub.s32 512, 512
          %163 = vsyncadd %s157, %s162
          %s164 = smul.addr %s22, 4
          %s165 = sadd.s32 %s24, %s164
          %s166 = smul.addr %s165, 128
          %s167 = scalar_lea.hbm %s1, %s166
          %s168 = sshll.u32 %s160, 4
          %s169 = int_to_ptr.vmem [resolvable:$true] %s168
          %174 = dma.hbm_to_vmem [thread:$0]  %s167, 512, %s169, %s157, 128, 128, 8
        $region24: #{tpu_custom_call.1} parent=19 // pred_fallthru
          _
      $region20: #{tpu_custom_call.1} parent=5 // pred_fallthru
        _
      %p175 = scmp.le.s32.totalorder 1, %s15
      %p176 = scmp.lt.s32.totalorder %s15, 3
      %p177 = pnand %p175, %p176
      %p178 = pneg %p177
      // Predicated region
      $region25: #{tpu_custom_call.1} parent=5 // pred_check
        _
      $region26: #{tpu_custom_call.1} parent=5 // pred_check_branch
        %180 = sbr.rel (%p177) target = $region28
      $region27: #{tpu_custom_call.1} parent=5 // pred_region
        %s181 = ssub.s32 %s15, 1
        // Predicated region
        $region29: #{tpu_custom_call.1} parent=27 // pred_check
          %p182 = pneg %p60
        $region30: #{tpu_custom_call.1} parent=27 // pred_check_branch
          %184 = sbr.rel (%p182) target = $region32
        $region31: #{tpu_custom_call.1} parent=27 // pred_region
          %185 = dma.done [#allocation3], 256
        $region32: #{tpu_custom_call.1} parent=27 // pred_fallthru
          _
        %s186 = sand.u32 %s75, 1
        %s187 = scalar_lea.sflag [#allocation6], %s186
        %s188 = sand.u32 %s75, 1
        %s189 = smul.addr %s188, 32
        %s190 = scalar_lea.vmem [#allocation5], %s189
        // Predicated region
        $region33: #{tpu_custom_call.1} parent=27 // pred_check
          %p191 = pneg %p88
        $region34: #{tpu_custom_call.1} parent=27 // pred_check_branch
          %193 = sbr.rel (%p191) target = $region36
        $region35: #{tpu_custom_call.1} parent=27 // pred_region
          %194 = dma.done %s187, 512
        $region36: #{tpu_custom_call.1} parent=27 // pred_fallthru
          _
        %p195 = pneg %p60
        %p196 = pneg %p57
        %s197 = sand.u32 %s75, 1
        %s198 = scalar_lea.sflag [#allocation6], %s197
        %s199 = sand.u32 %s75, 1
        %s200 = smul.addr %s199, 32
        %s201 = scalar_lea.vmem [#allocation5], %s200
        %p202 = pneg %p88
        %p203 = pneg %p85
        %p204 = pneg %p118
        %p205 = pneg %p115
        %s206 = sand.u32 %s105, 1
        %s207 = scalar_lea.sflag [#allocation4], %s206
        %s208 = sand.u32 %s105, 1
        %s209 = smul.addr %s208, 16
        %s210 = scalar_lea.vmem [#allocation7], %s209
        %s211 = smul.u32 2, %s26
        %s212 = smul.u32 2, %s26
        %v213 = vld [vmem:[#allocation2] sm:$0xff]
        %v214 = vld [vmem:[#allocation2 + $0x8] sm:$0xff]
        %v215 = vld [vmem:[%s190] sm:$0xff]
        %v216 = vld [vmem:[%s190 + $0x8] sm:$0xff]
        %v217 = vld [vmem:[%s190 + $0x10] sm:$0xff]
        %v218 = vld [vmem:[%s190 + $0x18] sm:$0xff]
        %vm219 = vcmask 261120
        %v221 = vsel %vm219, %v213, 0
        %v224 = vsel %vm219, %v214, 0
        %226 = vmatprep.subr.mxu0 0.0
        %227 = vmatpush1.msra.mxu0 0.0
        %228 = vmatprep.subr.mxu0 0.0
        %229 = vmatpush1.msra.mxu0 0.0
        %230 = vmatprep.subr.mxu0 0.0
        %231 = vmatpush1.msra.mxu0 0.0
        %232 = vmatprep.subr.mxu0 0.0
        %233 = vmatpush1.msra.mxu0 0.0
        %234 = vmatprep.subr.mxu0 0.0
        %235 = vmatpush1.msra.mxu0 0.0
        %236 = vmatprep.subr.mxu0 0.0
        %237 = vmatpush1.msra.mxu0 0.0
        %238 = vmatprep.subr.mxu0 0.0
        %239 = vmatpush1.msra.mxu0 0.0
        %240 = vmatprep.subr.mxu0 0.0
        %241 = vmatpush1.msra.mxu0 0.0
        %242 = vmatprep.subr.mxu0 0.0
        %243 = vmatpush1.msra.mxu0 0.0
        %244 = vmatprep.subr.mxu0 0.0
        %245 = vmatpush1.msra.mxu0 0.0
        %246 = vmatprep.subr.mxu0 0.0
        %247 = vmatpush1.msra.mxu0 0.0
        %248 = vmatprep.subr.mxu0 0.0
        %249 = vmatpush1.msra.mxu0 0.0
        %250 = vmatprep.subr.mxu0 0.0
        %251 = vmatpush1.msra.mxu0 %v218
        %252 = vmatprep.subr.mxu0 0.0
        %253 = vmatpush1.msra.mxu0 %v217
        %254 = vmatprep.subr.mxu0 0.0
        %255 = vmatpush1.msra.mxu0 %v216
        %256 = vmatprep.subr.mxu0 0.0
        %257 = vmatpush1.msra.mxu0 %v215
        %258 = vmatprep.subr.mxu0 0.0
        %259 = vmatpush2.msra.mxu0 0.0
        %260 = vmatprep.subr.mxu0 0.0
        %261 = vmatpush2.msra.mxu0 0.0
        %262 = vmatprep.subr.mxu0 0.0
        %263 = vmatpush2.msra.mxu0 0.0
        %264 = vmatprep.subr.mxu0 0.0
        %265 = vmatpush2.msra.mxu0 0.0
        %266 = vmatprep.subr.mxu0 0.0
        %267 = vmatpush2.msra.mxu0 0.0
        %268 = vmatprep.subr.mxu0 0.0
        %269 = vmatpush2.msra.mxu0 0.0
        %270 = vmatprep.subr.mxu0 0.0
        %271 = vmatpush2.msra.mxu0 0.0
        %272 = vmatprep.subr.mxu0 0.0
        %273 = vmatpush2.msra.mxu0 0.0
        %274 = vmatprep.subr.mxu0 0.0
        %275 = vmatpush2.msra.mxu0 0.0
        %276 = vmatprep.subr.mxu0 0.0
        %277 = vmatpush2.msra.mxu0 0.0
        %278 = vmatprep.subr.mxu0 0.0
        %279 = vmatpush2.msra.mxu0 0.0
        %280 = vmatprep.subr.mxu0 0.0
        %281 = vmatpush2.msra.mxu0 0.0
        %282 = vmatprep.subr.mxu0 0.0
        %283 = vmatpush2.msra.mxu0 0.0
        %284 = vmatprep.subr.mxu0 0.0
        %285 = vmatpush2.msra.mxu0 0.0
        %286 = vmatprep.subr.mxu0 0.0
        %287 = vmatpush2.msra.mxu0 0.0
        %288 = vmatprep.subr.mxu0 0.0
        %289 = vmatpush2.msra.mxu0 0.0
        %290 = vmatprep.mubr.f32.mxu0 0.0
        %291 = vmatmul.mubr.f32.gmra.mxu0 %v221
        %v292 = vpop.f32.mrf.mxu0
        %v293 = vadd.f32 0.0, %v292
        %v294 = vpop.f32.mrf.mxu0
        %295 = vmatprep.mubr.f32.mxu0 0.0
        %296 = vmatmul.mubr.f32.gmra.mxu0 %v224
        %v297 = vpop.f32.mrf.mxu0
        %v298 = vadd.f32 0.0, %v297
        %v299 = vpop.f32.mrf.mxu0
        %300 = vdwg.mxu0
        %v301 = vmul.f32 %v293, 0.01
        %v302 = vmul.f32 %v298, 0.01
        %v303 = vmax.f32 %v293, %v301
        %v304 = vmax.f32 %v298, %v302
        %305 = vst [vmem:[%s210] sm:$0xff] %v303
        %306 = vst [vmem:[%s210 + $0x8] sm:$0xff] %v304
        %s307 = sand.u32 %s105, 1
        %s308 = scalar_lea.sflag [#allocation4], %s307
        %s309 = sand.u32 %s105, 1
        %s310 = smul.addr %s309, 16
        %s311 = scalar_lea.vmem [#allocation7], %s310
        // Predicated region
        $region37: #{tpu_custom_call.1} parent=27 // pred_check
          %p312 = pneg %p115
        $region38: #{tpu_custom_call.1} parent=27 // pred_check_branch
          %314 = sbr.rel (%p312) target = $region40
        $region39: #{tpu_custom_call.1} parent=27 // pred_region
          %s315 = smul.u32 2, %s26
          %s317 = ssub.s32 256, 256
          %318 = vsyncadd %s308, %s317
          %s319 = sadd.s32 %s27, %s315
          %s320 = smul.addr %s25, 2
          %s321 = sadd.s32 %s319, %s320
          %s322 = smul.addr %s321, 128
          %s323 = scalar_lea.hbm %s2, %s322
          %s324 = sshll.u32 %s311, 4
          %s325 = int_to_ptr.vmem [resolvable:$true] %s324
          %330 = dma.vmem_to_hbm [thread:$0]  %s325, 256, %s323, %s308, 128, 128, 8
        $region40: #{tpu_custom_call.1} parent=27 // pred_fallthru
          _
      $region28: #{tpu_custom_call.1} parent=5 // pred_fallthru
        _
      %p331 = scmp.le.s32.totalorder 2, %s15
      // Predicated region
      $region41: #{tpu_custom_call.1} parent=5 // pred_check
        %p332 = pneg %p331
      $region42: #{tpu_custom_call.1} parent=5 // pred_check_branch
        %334 = sbr.rel (%p332) target = $region44
      $region43: #{tpu_custom_call.1} parent=5 // pred_region
        %s335 = ssub.s32 %s15, 2
        // Predicated region
        $region45: #{tpu_custom_call.1} parent=43 // pred_check
          %p336 = pneg %p121
        $region46: #{tpu_custom_call.1} parent=43 // pred_check_branch
          %338 = sbr.rel (%p336) target = $region48
        $region47: #{tpu_custom_call.1} parent=43 // pred_region
          %s339 = sand.u32 %s106, 1
          %s340 = scalar_lea.sflag [#allocation4], %s339
          %s341 = sand.u32 %s106, 1
          %s342 = smul.addr %s341, 16
          %s343 = scalar_lea.vmem [#allocation7], %s342
          %344 = dma.done %s340, 256
        $region48: #{tpu_custom_call.1} parent=43 // pred_fallthru
          _
      $region44: #{tpu_custom_call.1} parent=5 // pred_fallthru
        _
    $region6: #{tpu_custom_call.1} parent=1 // loop_footer
      %s19 = sadd.s32 1, %s15
    $region7: #{tpu_custom_call.1} parent=1 // loop_footer_branch
      %14 = sbr.rel target = $region3
    $region8: #{tpu_custom_call.1} parent=1 // loop_exit
      _
    %345 = vsyncpa [#allocation3], 1
    %s346 = scalar_lea.sflag [#allocation3], 1
    %347 = vsyncpa %s346, 1
    %348 = vsyncpa [#allocation6], 1
    %s349 = scalar_lea.sflag [#allocation6], 1
    %350 = vsyncpa %s349, 1
    %351 = vsyncpa [#allocation4], 1
    %s352 = scalar_lea.sflag [#allocation4], 1
    %353 = vsyncpa %s352, 1

</llo_original>
